<compile_context>
chip_gen: v5e
topology: v5e:2x2
jax: 0.10.0
libtpu: 0.0.40
codegen_flags: <defaults>
</compile_context>

<pallas_src>
import functools

import jax
import jax.numpy as jnp
from jax import lax
from jax.experimental import pallas as pl
from jax.experimental.pallas import tpu as pltpu

EPS = 1e-5
NEG_SLOPE = 0.2


def _round_up(v, m):
    return (v + m - 1) // m * m


def _vmem_limit_bytes():
    # Raise the scoped VMEM budget above the 32 MiB default (big whole-sample
    # blocks at realistic shapes), but never above 3/4 of physical VMEM.
    try:
        cap = pltpu.get_tpu_info().vmem_capacity_bytes
        return int(min(100 * 1024 * 1024, cap * 3 // 4))
    except Exception:
        return 64 * 1024 * 1024


def _dis_block_norm_kernel(w_ref, p_ref, o_ref, *, hw_valid):
    # w_ref: (Cop, Kp)  bf16   conv weight, (Cout, Cin*9) zero-padded
    # p_ref: (1, Kp, HWp) bf16 one sample's transposed im2col matrix
    # o_ref: (1, Cop, HWp) f32 normalized + LeakyReLU output (HW on lanes)
    y = jnp.dot(w_ref[...], p_ref[0],
                preferred_element_type=jnp.float32)          # (Cop, HWp) f32

    # InstanceNorm2d (affine=False, biased variance, eps=1e-5).  Conv bias is
    # omitted: it is exactly cancelled by the mean subtraction.  Padded HW
    # lanes are zero (zero patch columns) so raw-moment sums are unaffected;
    # divide by the true spatial size.
    inv_hw = 1.0 / hw_valid
    s1 = jnp.sum(y, axis=1, keepdims=True)                    # (Cop, 1)
    s2 = jnp.sum(y * y, axis=1, keepdims=True)                # (Cop, 1)
    mean = s1 * inv_hw
    var = s2 * inv_hw - mean * mean
    y = (y - mean) * lax.rsqrt(var + EPS)

    # LeakyReLU(0.2)
    y = jnp.where(y >= 0, y, NEG_SLOPE * y)
    o_ref[0] = y.astype(o_ref.dtype)


def _dis_block_plain_kernel(w_ref, b_ref, p_ref, o_ref):
    # normalize=False path: Conv + bias -> LeakyReLU (no InstanceNorm).
    y = jnp.dot(w_ref[...], p_ref[0],
                preferred_element_type=jnp.float32)          # (Cop, HWp) f32
    y = y + b_ref[...]                                       # (Cop, 1) bcast
    y = jnp.where(y >= 0, y, NEG_SLOPE * y)
    o_ref[0] = y.astype(o_ref.dtype)


def _im2col_t(x, k=3, stride=2, pad=1):
    # x: (N, C, H, W) -> transposed patch matrix (N, C*k*k, Ho*Wo), plus Ho/Wo.
    # K ordering is c-major, tap-minor, matching weight.reshape(Cout, C*k*k).
    N, C, H, W = x.shape
    xp = jnp.pad(x, ((0, 0), (0, 0), (pad, pad), (pad, pad)))
    Ho = (H + 2 * pad - k) // stride + 1
    Wo = (W + 2 * pad - k) // stride + 1
    cols = []
    for di in range(k):
        for dj in range(k):
            cols.append(xp[:, :, di:di + stride * Ho:stride,
                              dj:dj + stride * Wo:stride])     # (N, C, Ho, Wo)
    pat = jnp.stack(cols, axis=2)                              # (N, C, 9, Ho, Wo)
    pat = pat.reshape(N, C * k * k, Ho * Wo)                   # (N, K, HW)
    return pat, Ho, Wo


@functools.partial(jax.jit, static_argnames=("normalize",))
def dis_block_forward(x, weight, bias, normalize=True):
    # x: (N, Cin, H, W); weight: (Cout, Cin, 3, 3); bias: (Cout,)
    N, Cin, H, W = x.shape
    Cout = weight.shape[0]

    # bf16 activations before im2col so the gather/stack pass is also halved.
    xb = x.astype(jnp.bfloat16)
    pat, Ho, Wo = _im2col_t(xb)                                # (N, K, HW) bf16
    HW = Ho * Wo
    K = Cin * 9

    Kp = _round_up(K, 8)        # sublane-aligned contraction dim
    HWp = _round_up(HW, 128)    # lane-dense output / patch columns
    Cop = _round_up(Cout, 8)    # sublane-aligned output channels

    if Kp != K or HWp != HW:
        pat = jnp.pad(pat, ((0, 0), (0, Kp - K), (0, HWp - HW)))

    w_mat = weight.reshape(Cout, K).astype(jnp.bfloat16)       # (Cout, K)
    if Cop != Cout or Kp != K:
        w_mat = jnp.pad(w_mat, ((0, Cop - Cout), (0, Kp - K)))

    if normalize:
        kernel = functools.partial(_dis_block_norm_kernel, hw_valid=float(HW))
        in_specs = [
            pl.BlockSpec((Cop, Kp), lambda n: (0, 0)),          # resident weight
            pl.BlockSpec((1, Kp, HWp), lambda n: (n, 0, 0)),    # per-sample patches
        ]
        args = (w_mat, pat)
    else:
        b_mat = bias.astype(jnp.float32).reshape(Cout, 1)
        if Cop != Cout:
            b_mat = jnp.pad(b_mat, ((0, Cop - Cout), (0, 0)))
        kernel = _dis_block_plain_kernel
        in_specs = [
            pl.BlockSpec((Cop, Kp), lambda n: (0, 0)),
            pl.BlockSpec((Cop, 1), lambda n: (0, 0)),
            pl.BlockSpec((1, Kp, HWp), lambda n: (n, 0, 0)),
        ]
        args = (w_mat, b_mat, pat)

    out = pl.pallas_call(
        kernel,
        out_shape=jax.ShapeDtypeStruct((N, Cop, HWp), jnp.float32),
        grid_spec=pltpu.PrefetchScalarGridSpec(
            num_scalar_prefetch=0,
            grid=(N,),
            in_specs=in_specs,
            out_specs=pl.BlockSpec((1, Cop, HWp), lambda n: (n, 0, 0)),
        ),
        compiler_params=pltpu.CompilerParams(
            dimension_semantics=("parallel",),
            vmem_limit_bytes=_vmem_limit_bytes()),
    )(*args)

    # (N, Cop, HWp) -> (N, Cout, Ho, Wo): plain slice + reshape, no transpose.
    out = out[:, :Cout, :HW]
    return out.reshape(N, Cout, Ho, Wo)


def _reference(x, weight, bias, normalize=True):
    y = lax.conv_general_dilated(
        x, weight, window_strides=(2, 2), padding=((1, 1), (1, 1)),
        dimension_numbers=("NCHW", "OIHW", "NCHW"),
        preferred_element_type=jnp.float32)
    y = y + bias.reshape(1, -1, 1, 1).astype(jnp.float32)
    if normalize:
        mean = jnp.mean(y, axis=(2, 3), keepdims=True)
        var = jnp.mean((y - mean) ** 2, axis=(2, 3), keepdims=True)
        y = (y - mean) * lax.rsqrt(var + EPS)
    return jnp.where(y >= 0, y, NEG_SLOPE * y)


if __name__ == "__main__":
    key = jax.random.PRNGKey(0)
    kx, kw, kb = jax.random.split(key, 3)

    N, Cin, Cout, H, W = 2, 4, 8, 16, 16
    x = jax.random.normal(kx, (N, Cin, H, W), dtype=jnp.float32)
    # Deterministic synthetic conv params (PyTorch shapes: (Cout, Cin, 3, 3)).
    fan_in = Cin * 9
    bound = 1.0 / (fan_in ** 0.5)
    weight = jax.random.uniform(kw, (Cout, Cin, 3, 3), jnp.float32, -bound, bound)
    bias = jax.random.uniform(kb, (Cout,), jnp.float32, -bound, bound)

    # The kernel uses bf16 matmul operands with f32 accumulation, so the tight
    # check runs the f32 reference on bf16-quantized inputs (only summation
    # order differs); a looser sanity check is kept against the pure-f32 ref.
    xq = x.astype(jnp.bfloat16).astype(jnp.float32)
    wq = weight.astype(jnp.bfloat16).astype(jnp.float32)

    # normalize=True path: Conv -> InstanceNorm -> LeakyReLU
    out = jax.block_until_ready(dis_block_forward(x, weight, bias))
    assert out.shape == (N, Cout, H // 2, W // 2), out.shape
    ref_q = jax.block_until_ready(_reference(xq, wq, bias, normalize=True))
    ref_f = jax.block_until_ready(_reference(x, weight, bias, normalize=True))
    assert jnp.allclose(out, ref_q, atol=5e-4, rtol=5e-4), float(
        jnp.max(jnp.abs(out - ref_q)))
    assert jnp.allclose(out, ref_f, atol=5e-2, rtol=5e-2), float(
        jnp.max(jnp.abs(out - ref_f)))

    # normalize=False path: Conv + bias -> LeakyReLU
    out2 = jax.block_until_ready(dis_block_forward(x, weight, bias,
                                                   normalize=False))
    ref2_q = jax.block_until_ready(_reference(xq, wq, bias, normalize=False))
    assert out2.shape == (N, Cout, H // 2, W // 2), out2.shape
    assert jnp.allclose(out2, ref2_q, atol=5e-4, rtol=5e-4), float(
        jnp.max(jnp.abs(out2 - ref2_q)))

    print("KERNEL_OK")
</pallas_src>

<mosaic_0001>
module attributes {stable_mosaic.version = 11 : i64} {
  func.func @_dis_block_norm_kernel(%arg0: i32, %arg1: memref<8x40xbf16, #tpu.memory_space<vmem>>, %arg2: memref<1x40x128xbf16, #tpu.memory_space<vmem>>, %arg3: memref<1x8x128xf32, #tpu.memory_space<vmem>>) attributes {dimension_semantics = [#tpu.dimension_semantics<parallel>], iteration_bounds = array<i64: 2>, scalar_prefetch = 0 : i64, scratch_operands = 0 : i64, tpu.core_type = #tpu.core_type<tc>, window_params = [{pipeline_mode = #tpu.pipeline_mode<synchronous>, transform_indices = @transform_0, window_bounds = array<i64: 8, 40>}, {transform_indices = @transform_1, window_bounds = array<i64: 1, 40, 128>}, {transform_indices = @transform_2, window_bounds = array<i64: 1, 8, 128>}]} {
    %c0 = arith.constant 0 : index
    %c0_0 = arith.constant 0 : index
    %0 = vector.load %arg1[%c0, %c0_0] : memref<8x40xbf16, #tpu.memory_space<vmem>>, vector<8x40xbf16>
    %c0_1 = arith.constant 0 : index
    %c0_2 = arith.constant 0 : index
    %c0_3 = arith.constant 0 : index
    %1 = vector.load %arg2[%c0_1, %c0_2, %c0_3] : memref<1x40x128xbf16, #tpu.memory_space<vmem>>, vector<1x40x128xbf16>
    %2 = vector.shape_cast %1 : vector<1x40x128xbf16> to vector<40x128xbf16>
    %cst = arith.constant dense<0.000000e+00> : vector<8x128xf32>
    %3 = tpu.matmul %0, %2, %cst {dimension_numbers = #tpu.dot_dimension_numbers<[1], [0], [0], [1], [0, 0, 1, 1], [], []>} : vector<8x40xbf16>, vector<40x128xbf16>, vector<8x128xf32> -> vector<8x128xf32>
    %cst_4 = arith.constant dense<0.000000e+00> : vector<8xf32>
    %4 = vector.multi_reduction <add>, %3, %cst_4 [1] : vector<8x128xf32> to vector<8xf32>
    %5 = vector.shape_cast %4 : vector<8xf32> to vector<8x1xf32>
    %6 = arith.mulf %3, %3 : vector<8x128xf32>
    %cst_5 = arith.constant dense<0.000000e+00> : vector<8xf32>
    %7 = vector.multi_reduction <add>, %6, %cst_5 [1] : vector<8x128xf32> to vector<8xf32>
    %8 = vector.shape_cast %7 : vector<8xf32> to vector<8x1xf32>
    %cst_6 = arith.constant 1.562500e-02 : f32
    %9 = vector.broadcast %cst_6 : f32 to vector<8x1xf32>
    %10 = arith.mulf %5, %9 : vector<8x1xf32>
    %cst_7 = arith.constant 1.562500e-02 : f32
    %11 = vector.broadcast %cst_7 : f32 to vector<8x1xf32>
    %12 = arith.mulf %8, %11 : vector<8x1xf32>
    %13 = arith.mulf %10, %10 : vector<8x1xf32>
    %14 = arith.subf %12, %13 : vector<8x1xf32>
    %15 = vector.broadcast %10 : vector<8x1xf32> to vector<8x128xf32>
    %16 = arith.subf %3, %15 : vector<8x128xf32>
    %cst_8 = arith.constant 9.99999974E-6 : f32
    %17 = vector.broadcast %cst_8 : f32 to vector<8x1xf32>
    %18 = arith.addf %14, %17 : vector<8x1xf32>
    %19 = math.rsqrt %18 : vector<8x1xf32>
    %20 = vector.broadcast %19 : vector<8x1xf32> to vector<8x128xf32>
    %21 = arith.mulf %16, %20 : vector<8x128xf32>
    %cst_9 = arith.constant 0.000000e+00 : f32
    %22 = vector.broadcast %cst_9 : f32 to vector<8x128xf32>
    %23 = arith.cmpf oge, %21, %22 : vector<8x128xf32>
    %cst_10 = arith.constant 2.000000e-01 : f32
    %24 = vector.broadcast %cst_10 : f32 to vector<8x128xf32>
    %25 = arith.mulf %24, %21 : vector<8x128xf32>
    %26 = arith.select %23, %21, %25 : vector<8x128xi1>, vector<8x128xf32>
    %c0_11 = arith.constant 0 : index
    %c0_12 = arith.constant 0 : index
    %c0_13 = arith.constant 0 : index
    %27 = vector.load %arg3[%c0_11, %c0_12, %c0_13] : memref<1x8x128xf32, #tpu.memory_space<vmem>>, vector<1x8x128xf32>
    %28 = vector.shape_cast %27 : vector<1x8x128xf32> to vector<8x128xf32>
    %29 = vector.shape_cast %26 : vector<8x128xf32> to vector<1x8x128xf32>
    tpu.vector_store %arg3[%c0_11, %c0_12, %c0_13], %29 {strides = array<i32>} : memref<1x8x128xf32, #tpu.memory_space<vmem>>, vector<1x8x128xf32>,
    return
  }
  func.func @transform_0(%arg0: i32) -> (i32, i32) {
    %c0_i32 = arith.constant 0 : i32
    %c0_i32_0 = arith.constant 0 : i32
    %c0_i32_1 = arith.constant 0 : i32
    return %c0_i32, %c0_i32_0 : i32, i32
  }
  func.func @transform_1(%arg0: i32) -> (i32, i32, i32) {
    %c0_i32 = arith.constant 0 : i32
    %c0_i32_0 = arith.constant 0 : i32
    %c0_i32_1 = arith.constant 0 : i32
    return %arg0, %c0_i32, %c0_i32_0 : i32, i32, i32
  }
  func.func @transform_2(%arg0: i32) -> (i32, i32, i32) {
    %c0_i32 = arith.constant 0 : i32
    %c0_i32_0 = arith.constant 0 : i32
    %c0_i32_1 = arith.constant 0 : i32
    return %arg0, %c0_i32, %c0_i32_0 : i32, i32, i32
  }
}

</mosaic_0001>

<llo_original>
// kernel: dis_block_forward.1
$region0: #{dis_block_forward.1}
  #allocation0 [shape = 'u32[]', space=smem, size = 0x4, offset = 0x4, fixed_abs, tag = 'smem constant byte address 0x4 - core index']
  #allocation1 [shape = 'u32[72,128]{1,0:T(1,128)}', space=vmem, size = 0x9000, scoped, tag = 'internal scratch']
  %s0 = inlined_call_operand.vmem [shape: bf16[8,40], index: 0, kind: input, shape index: {}]
  %s1 = inlined_call_operand.vmem [shape: bf16[2,40,128], index: 1, kind: input, shape index: {}]
  %s2 = inlined_call_operand.vmem [shape: f32[2,8,128], index: 2, kind: output, shape index: {}]
  %s3 = sld [smem:[#allocation0]]
  $region41: #{dis_block_forward.1} parent=0
    _
  %s5 = ssub.s32 1, %s3
  %s6 = scalar_select 0, %s5, %s3
  loop: start=0, step=1, limit=4
  $region2: #{dis_block_forward.1} parent=0 // loop_pre_header
    _
  $region3: #{dis_block_forward.1} parent=0 // loop_header
    %s8 = sphi 0, %s12
    %p9 = scmp.ge.s32.totalorder %s8, 4
    %s16 = sphi 0, %s16
    %s18 = sphi 0, %s16
    %s19 = sphi 0, %s18
    %s33 = sphi 0, %s19
    %s39 = sphi 0, %s41
    %s42 = sphi 0, %s39
    %s43 = sphi 0, %s42
    %s59 = sphi 0, %s43
    %s65 = sphi 0, %s67
    %s68 = sphi 0, %s65
    %s69 = sphi 0, %s68
    %s85 = sphi 0, %s69
  $region4: #{dis_block_forward.1} parent=0 // loop_header_branch
    %11 = sbr.rel (%p9) target = $region8
  $region5: #{dis_block_forward.1} parent=0 // loop_body
    %s13 = ssub.s32 %s8, 1
    %s14 = ssub.s32 %s8, 2
    %s15 = sadd.s32 %s8, 1
    %s17 = sadd.s32 %s16, 1
    %p20 = scmp.eq.s32.totalorder %s8, 1
    %p21 = scmp.ne.s32.totalorder %s16, %s18
    %p22 = scmp.eq.s32.totalorder %s8, 0
    %p23 = por %p21, %p22
    %p24 = scmp.ne.s32.totalorder %s16, %s18
    %p25 = scmp.eq.s32.totalorder %s13, 1
    %p26 = por %p24, %p25
    %p27 = scmp.ne.s32.totalorder %s18, %s19
    %p28 = scmp.eq.s32.totalorder %s13, 0
    %p29 = por %p27, %p28
    %p30 = scmp.ne.s32.totalorder %s18, %s19
    %p31 = scmp.eq.s32.totalorder %s14, 1
    %p32 = por %p30, %p31
    %p34 = scmp.ne.s32.totalorder %s19, %s33
    %p35 = scmp.eq.s32.totalorder %s14, 0
    %p36 = por %p34, %p35
    %s37 = ssub.s32 %s8, %s15
    %p38 = scmp.eq.s32.totalorder %s37, 0
    %s40 = sadd.s32 %s39, 1
    %s41 = scalar_select %p38, %s39, %s40
    %p44 = pneg %p38
    %p45 = scmp.eq.s32.totalorder %s8, 1
    %p46 = por %p44, %p45
    %p47 = scmp.ne.s32.totalorder %s39, %s42
    %p48 = scmp.eq.s32.totalorder %s8, 0
    %p49 = por %p47, %p48
    %p50 = scmp.ne.s32.totalorder %s39, %s42
    %p51 = scmp.eq.s32.totalorder %s13, 1
    %p52 = por %p50, %p51
    %p53 = scmp.ne.s32.totalorder %s42, %s43
    %p54 = scmp.eq.s32.totalorder %s13, 0
    %p55 = por %p53, %p54
    %p56 = scmp.ne.s32.totalorder %s42, %s43
    %p57 = scmp.eq.s32.totalorder %s14, 1
    %p58 = por %p56, %p57
    %p60 = scmp.ne.s32.totalorder %s43, %s59
    %p61 = scmp.eq.s32.totalorder %s14, 0
    %p62 = por %p60, %p61
    %s63 = ssub.s32 %s8, %s15
    %p64 = scmp.eq.s32.totalorder %s63, 0
    %s66 = sadd.s32 %s65, 1
    %s67 = scalar_select %p64, %s65, %s66
    %p70 = pneg %p64
    %p71 = scmp.eq.s32.totalorder %s8, 1
    %p72 = por %p70, %p71
    %p73 = scmp.ne.s32.totalorder %s65, %s68
    %p74 = scmp.eq.s32.totalorder %s8, 0
    %p75 = por %p73, %p74
    %p76 = scmp.ne.s32.totalorder %s65, %s68
    %p77 = scmp.eq.s32.totalorder %s13, 1
    %p78 = por %p76, %p77
    %p79 = scmp.ne.s32.totalorder %s68, %s69
    %p80 = scmp.eq.s32.totalorder %s13, 0
    %p81 = por %p79, %p80
    %p82 = scmp.ne.s32.totalorder %s68, %s69
    %p83 = scmp.eq.s32.totalorder %s14, 1
    %p84 = por %p82, %p83
    %p86 = scmp.ne.s32.totalorder %s69, %s85
    %p87 = scmp.eq.s32.totalorder %s14, 0
    %p88 = por %p86, %p87
    %p89 = scmp.le.s32.totalorder 1, %s8
    %p90 = scmp.lt.s32.totalorder %s8, 3
    %p91 = pnand %p89, %p90
    %p92 = pneg %p91
    // Predicated region
    $region9: #{dis_block_forward.1} parent=5 // pred_check
      _
    $region10: #{dis_block_forward.1} parent=5 // pred_check_branch
      %94 = sbr.rel (%p91) target = $region12
    $region11: #{dis_block_forward.1} parent=5 // pred_region
      %s95 = ssub.s32 %s8, 1
      // Predicated region
      $region13: #{dis_block_forward.1} parent=11 // pred_check
        %p96 = pneg %p29
      $region14: #{dis_block_forward.1} parent=11 // pred_check_branch
        %98 = sbr.rel (%p96) target = $region16
      $region15: #{dis_block_forward.1} parent=11 // pred_region
        _
      $region16: #{dis_block_forward.1} parent=11 // pred_fallthru
        _
    $region12: #{dis_block_forward.1} parent=5 // pred_fallthru
      _
    %p99 = scmp.lt.s32.totalorder %s8, 2
    // Predicated region
    $region17: #{dis_block_forward.1} parent=5 // pred_check
      %p100 = pneg %p99
    $region18: #{dis_block_forward.1} parent=5 // pred_check_branch
      %102 = sbr.rel (%p100) target = $region20
    $region19: #{dis_block_forward.1} parent=5 // pred_region
      // Predicated region
      $region21: #{dis_block_forward.1} parent=19 // pred_check
        %p103 = pneg %p49
      $region22: #{dis_block_forward.1} parent=19 // pred_check_branch
        %105 = sbr.rel (%p103) target = $region24
      $region23: #{dis_block_forward.1} parent=19 // pred_region
        %p106 = scmp.lt.s32.totalorder %s8, 1
        %s107 = scalar_select %p106, %s8, 1
        %s108 = smul.addr %s107, 5
        %s109 = smul.addr %s108, 4
        %s110 = scalar_lea.vmem %s1, %s109
      $region24: #{dis_block_forward.1} parent=19 // pred_fallthru
        _
    $region20: #{dis_block_forward.1} parent=5 // pred_fallthru
      _
    %p111 = scmp.le.s32.totalorder 1, %s8
    %p112 = scmp.lt.s32.totalorder %s8, 3
    %p113 = pnand %p111, %p112
    %p114 = pneg %p113
    // Predicated region
    $region25: #{dis_block_forward.1} parent=5 // pred_check
      _
    $region26: #{dis_block_forward.1} parent=5 // pred_check_branch
      %116 = sbr.rel (%p113) target = $region28
    $region27: #{dis_block_forward.1} parent=5 // pred_region
      %s117 = ssub.s32 %s8, 1
      %p118 = pneg %p29
      %p119 = pneg %p26
      %p120 = scmp.lt.s32.totalorder %s13, 1
      %s121 = scalar_select %p120, %s13, 1
      %s122 = smul.addr %s121, 5
      %s123 = smul.addr %s122, 4
      %s124 = scalar_lea.vmem %s1, %s123
      %p125 = pneg %p55
      %p126 = pneg %p52
      %p127 = pneg %p81
      %p128 = pneg %p78
      %p129 = scmp.lt.s32.totalorder %s13, 1
      %s130 = scalar_select %p129, %s13, 1
      %s131 = smul.addr %s130, 8
      %s132 = scalar_lea.vmem %s2, %s131
      %p133 = scmp.lt.s32.totalorder %s13, 1
      %s134 = scalar_select %p133, %s13, 1
      %s135 = smul.addr %s134, 5
      %s136 = smul.addr %s135, 4
      %s137 = scalar_lea.vmem %s1, %s136
      %p138 = scmp.lt.s32.totalorder %s13, 1
      %s139 = scalar_select %p138, %s13, 1
      %s140 = smul.addr %s139, 8
      %s141 = scalar_lea.vmem %s2, %s140
      %v143 = vld [vmem:[%s0] sm:$0xf]
      %v144 = vld [vmem:[%s137] sm:$0xf]
      %v145 = vld [vmem:[%s137 + $0x4] sm:$0xf]
      %v146 = vld [vmem:[%s137 + $0x8] sm:$0xf]
      %v147 = vld [vmem:[%s137 + $0xc] sm:$0xf]
      %v148 = vld [vmem:[%s137 + $0x10] sm:$0xf]
      %v154 = vunpack.c.l.b16 %v144
      %v155 = vunpack.c.l.b16 %v145
      %v156 = vunpack.c.l.b16 %v146
      %v157 = vunpack.c.l.b16 %v147
      %v158 = vunpack.c.l.b16 %v148
      %v159 = vpack.c.b16 %v155, %v154
      %v160 = vpack.c.b16 %v157, %v156
      %v161 = vpack.c.b16 %v158, %v158
      %vm164 = vcmask 326656
      %v166 = vsel %vm164, %v143, 0
      %vm168 = vcmask 1043456
      %v170 = vsel %vm168, %v161, 0
      %172 = vmatpush.bf16.msra.mxu0 0
      %173 = vmatpush.bf16.msra.mxu0 0
      %174 = vmatpush.bf16.msra.mxu0 0
      %175 = vmatpush.bf16.msra.mxu0 0
      %176 = vmatpush.bf16.msra.mxu0 0
      %177 = vmatpush.bf16.msra.mxu0 %v170
      %178 = vmatpush.bf16.msra.mxu0 %v160
      %179 = vmatpush.bf16.msra.mxu0 %v159
      %180 = vmatmul.bf16.gmra.mxu0 %v166
      %v181 = vpop.f32.mrf.mxu0
      %v182 = vadd.f32 0.0, %v181
      %v183 = vpop.f32.mrf.mxu0
      %184 = vdwg.mxu0
      %185 = vadd.xlane.f32.xlu0 %v182
      %v186 = vpop.xlane.xlu0 %185
      %v187 = vmul.f32 %v182, %v182
      %188 = vadd.xlane.f32.xlu0 %v187
      %v189 = vpop.xlane.xlu0 %188
      %v190 = vmul.f32 %v186, 0.015625
      %v191 = vmul.f32 %v189, 0.015625
      %v192 = vmul.f32 %v190, %v190
      %v193 = vsub.f32 %v191, %v192
      %v194 = vsub.f32 %v182, %v190
      %v195 = vadd.f32 %v193, 1e-05
      %v196 = vrsqrt.pop %v195
      %v197 = vmul.f32 %v196, %v195
      %v198 = vmul.f32 %v197, %v196
      %v199 = vmul.f32 0.5, %v198
      %v200 = vsub.f32 1.5, %v199
      %v201 = vmul.f32 %v196, %v200
      %vm202 = vweird.f32 %v195
      %vm203 = vweird.f32 %v196
      %vm204 = vmor %vm202, %vm203
      %v205 = vsel %vm204, %v196, %v201
      %v206 = vmul.f32 %v194, %v205
      %vm207 = vcmp.ge.f32.partialorder %v206, 0.0
      %v208 = vmul.f32 %v206, 0.2
      %v209 = vsel %vm207, %v206, %v208
      %210 = vst [vmem:[%s141] sm:$0xff] %v209
      %p211 = scmp.lt.s32.totalorder %s13, 1
      %s212 = scalar_select %p211, %s13, 1
      %s213 = smul.addr %s212, 8
      %s214 = scalar_lea.vmem %s2, %s213
      // Predicated region
      $region29: #{dis_block_forward.1} parent=27 // pred_check
        %p215 = pneg %p78
      $region30: #{dis_block_forward.1} parent=27 // pred_check_branch
        %217 = sbr.rel (%p215) target = $region32
      $region31: #{dis_block_forward.1} parent=27 // pred_region
        _
      $region32: #{dis_block_forward.1} parent=27 // pred_fallthru
        _
    $region28: #{dis_block_forward.1} parent=5 // pred_fallthru
      _
    %p218 = scmp.le.s32.totalorder 2, %s8
    // Predicated region
    $region33: #{dis_block_forward.1} parent=5 // pred_check
      %p219 = pneg %p218
    $region34: #{dis_block_forward.1} parent=5 // pred_check_branch
      %221 = sbr.rel (%p219) target = $region36
    $region35: #{dis_block_forward.1} parent=5 // pred_region
      %s222 = ssub.s32 %s8, 2
      // Predicated region
      $region37: #{dis_block_forward.1} parent=35 // pred_check
        %p223 = pneg %p84
      $region38: #{dis_block_forward.1} parent=35 // pred_check_branch
        %225 = sbr.rel (%p223) target = $region40
      $region39: #{dis_block_forward.1} parent=35 // pred_region
        %p226 = scmp.lt.s32.totalorder %s14, 1
        %s227 = scalar_select %p226, %s14, 1
        %s228 = smul.addr %s227, 8
        %s229 = scalar_lea.vmem %s2, %s228
      $region40: #{dis_block_forward.1} parent=35 // pred_fallthru
        _
    $region36: #{dis_block_forward.1} parent=5 // pred_fallthru
      _
  $region6: #{dis_block_forward.1} parent=0 // loop_footer
    %s12 = sadd.s32 1, %s8
  $region7: #{dis_block_forward.1} parent=0 // loop_footer_branch
    %7 = sbr.rel target = $region3
  $region8: #{dis_block_forward.1} parent=0 // loop_exit
    _

</llo_original>
